<compile_context>
chip_gen: v6e
topology: v6e:2x2x1
jax: 0.10.0
libtpu: 0.0.40
codegen_flags: <defaults>
</compile_context>

<pallas_src>
import jax
import jax.numpy as jnp
from jax.experimental import pallas as pl
from jax.experimental.pallas import tpu as pltpu

LEAKY_SLOPE = 0.01
BN_EPS = 1e-5
LANE = 128
SUBLANE = 8
TILE_M_MAX = 512                      # sized for v7x's 64 MiB VMEM; tiny for v5e/v6e too
VMEM_LIMIT = 48 * 1024 * 1024         # below v7x physical VMEM, above default scoped limits


def _round_up(x, m):
    return ((x + m - 1) // m) * m


def _conv_stats_kernel(patches_ref, w_ref, conv_ref, stats_ref):
    # patches: (tile_m, K_pad) bf16, w: (K_pad, C_pad) bf16
    # conv out: (tile_m, C_pad) f32, stats out: (2, C_pad) f32 [row0 = sum, row1 = sumsq]
    i = pl.program_id(0)

    conv = jnp.dot(patches_ref[...], w_ref[...], preferred_element_type=jnp.float32)
    conv_ref[...] = conv

    s = jnp.sum(conv, axis=0, keepdims=True)           # (1, C_pad)
    sq = jnp.sum(conv * conv, axis=0, keepdims=True)   # (1, C_pad)
    tile_stats = jnp.concatenate([s, sq], axis=0)      # (2, C_pad)

    @pl.when(i == 0)
    def _():
        stats_ref[...] = jnp.zeros_like(stats_ref)

    stats_ref[...] += tile_stats                       # global accumulator (same block each step)


def _bn_lrelu_kernel(conv_ref, scale_ref, shift_ref, out_ref):
    # conv: (tile_m, C_pad) f32, scale/shift: (1, C_pad) f32
    y = conv_ref[...] * scale_ref[...] + shift_ref[...]
    out_ref[...] = jnp.where(y > 0, y, LEAKY_SLOPE * y).astype(out_ref.dtype)


def downsample_forward(x, weight, bias, gamma, beta):
    """x: (N, C, H, W) f32. weight: (C, C, 3, 3), bias/gamma/beta: (C,). Returns (N, C, H//2, W//2)."""
    del bias  # conv bias is exactly cancelled by the train-mode BatchNorm mean subtraction
    N, C, H, W = x.shape
    Ho, Wo = H // 2, W // 2
    M = N * Ho * Wo
    K = 9 * C

    # NHWC + reflect pad; im2col column order (kh, kw, c_in) so the 9x-expanded tensor
    # never goes through a full transpose.
    x_nhwc = jnp.transpose(x, (0, 2, 3, 1))                               # (N, H, W, C)
    xp = jnp.pad(x_nhwc, ((0, 0), (1, 1), (1, 1), (0, 0)), mode="reflect")
    taps = [xp[:, kh:kh + 2 * Ho:2, kw:kw + 2 * Wo:2, :]
            for kh in range(3) for kw in range(3)]
    patches = jnp.concatenate(taps, axis=-1).reshape(M, K)                # (M, 9C)
    # TODO(synk): move the 9-tap conv into the kernel (9 accumulated matmuls over NHWC blocks)
    # to eliminate the 9x im2col HBM expansion entirely.

    # Weight (C_out, C_in, 3, 3) -> (kh, kw, c_in, c_out) to match patch column order.
    w2 = jnp.transpose(weight, (2, 3, 1, 0)).reshape(K, C)

    # MXU / lane friendly padding and M tiling (zero rows/cols are harmless: they
    # contribute 0 to sum/sumsq, and stats are divided by the true M).
    K_pad = _round_up(K, LANE)
    C_pad = _round_up(C, LANE)
    tile_m = min(TILE_M_MAX, _round_up(M, SUBLANE))
    M_pad = _round_up(M, tile_m)
    n_tiles = M_pad // tile_m

    patches_p = jnp.pad(patches, ((0, M_pad - M), (0, K_pad - K))).astype(jnp.bfloat16)
    w_p = jnp.pad(w2, ((0, K_pad - K), (0, C_pad - C))).astype(jnp.bfloat16)

    # ---- Pass 1: conv (bf16 MXU, f32 acc) + global per-channel sum / sumsq ----
    cost1 = pl.CostEstimate(
        flops=2 * M_pad * K_pad * C_pad,
        transcendentals=0,
        bytes_accessed=(M_pad * K_pad * 2 + K_pad * C_pad * 2
                        + M_pad * C_pad * 4 + 2 * C_pad * 4),
    )
    conv, stats = pl.pallas_call(
        _conv_stats_kernel,
        out_shape=(
            jax.ShapeDtypeStruct((M_pad, C_pad), jnp.float32),
            jax.ShapeDtypeStruct((2, C_pad), jnp.float32),
        ),
        grid_spec=pltpu.PrefetchScalarGridSpec(
            num_scalar_prefetch=0,
            grid=(n_tiles,),
            in_specs=[
                pl.BlockSpec((tile_m, K_pad), lambda i: (i, 0)),
                pl.BlockSpec((K_pad, C_pad), lambda i: (0, 0)),
            ],
            out_specs=(
                pl.BlockSpec((tile_m, C_pad), lambda i: (i, 0)),
                pl.BlockSpec((2, C_pad), lambda i: (0, 0)),
            ),
        ),
        compiler_params=pltpu.CompilerParams(
            dimension_semantics=("arbitrary",),     # stats accumulator carried across M tiles
            vmem_limit_bytes=VMEM_LIMIT,
        ),
        cost_estimate=cost1,
    )(patches_p, w_p)

    # ---- Tiny per-channel math on (C_pad,) vectors (plain JAX) ----
    mean = stats[0] / M
    var = stats[1] / M - mean * mean                 # biased variance, training-mode BN
    inv_std = jax.lax.rsqrt(var + BN_EPS)
    gamma_p = jnp.pad(gamma, (0, C_pad - C))
    beta_p = jnp.pad(beta, (0, C_pad - C))
    scale = (gamma_p * inv_std).reshape(1, C_pad).astype(jnp.float32)
    shift = (beta_p - mean * gamma_p * inv_std).reshape(1, C_pad).astype(jnp.float32)

    # ---- Pass 2: normalize + affine + LeakyReLU (fully parallel over M tiles) ----
    out = pl.pallas_call(
        _bn_lrelu_kernel,
        out_shape=jax.ShapeDtypeStruct((M_pad, C_pad), jnp.float32),
        grid_spec=pltpu.PrefetchScalarGridSpec(
            num_scalar_prefetch=0,
            grid=(n_tiles,),
            in_specs=[
                pl.BlockSpec((tile_m, C_pad), lambda i: (i, 0)),
                pl.BlockSpec((1, C_pad), lambda i: (0, 0)),
                pl.BlockSpec((1, C_pad), lambda i: (0, 0)),
            ],
            out_specs=pl.BlockSpec((tile_m, C_pad), lambda i: (i, 0)),
        ),
        compiler_params=pltpu.CompilerParams(
            dimension_semantics=("parallel",),
            vmem_limit_bytes=VMEM_LIMIT,
        ),
    )(conv, scale, shift)

    out = out[:M, :C].reshape(N, Ho, Wo, C)
    return jnp.transpose(out, (0, 3, 1, 2))


if __name__ == "__main__":
    key = jax.random.PRNGKey(0)
    N, C, H, W = 2, 4, 16, 16
    k_x, k_w, k_b = jax.random.split(key, 3)

    x = jax.random.normal(k_x, (N, C, H, W), dtype=jnp.float32)
    # Deterministic synthetic parameters (Conv2d-style init; BN defaults).
    fan_in = C * 3 * 3
    bound = 1.0 / (fan_in ** 0.5)
    weight = jax.random.uniform(k_w, (C, C, 3, 3), minval=-bound, maxval=bound,
                                dtype=jnp.float32)
    bias = jax.random.uniform(k_b, (C,), minval=-bound, maxval=bound,
                              dtype=jnp.float32)
    gamma = jnp.ones((C,), jnp.float32)
    beta = jnp.zeros((C,), jnp.float32)

    fwd = jax.jit(downsample_forward)
    out = fwd(x, weight, bias, gamma, beta)
    jax.block_until_ready(out)
    assert out.shape == (N, C, H // 2, W // 2)
    assert bool(jnp.all(jnp.isfinite(out)))
    print("KERNEL_OK")
</pallas_src>

<mosaic_0001>
module attributes {stable_mosaic.version = 11 : i64} {
  func.func @_bn_lrelu_kernel(%arg0: i32, %arg1: memref<128x128xf32, #tpu.memory_space<vmem>>, %arg2: memref<1x128xf32, #tpu.memory_space<vmem>>, %arg3: memref<1x128xf32, #tpu.memory_space<vmem>>, %arg4: memref<128x128xf32, #tpu.memory_space<vmem>>) attributes {dimension_semantics = [#tpu.dimension_semantics<parallel>], iteration_bounds = array<i64: 1>, scalar_prefetch = 0 : i64, scratch_operands = 0 : i64, tpu.core_type = #tpu.core_type<tc>, window_params = [{transform_indices = @transform_0, window_bounds = array<i64: 128, 128>}, {pipeline_mode = #tpu.pipeline_mode<synchronous>, transform_indices = @transform_1, window_bounds = array<i64: 1, 128>}, {pipeline_mode = #tpu.pipeline_mode<synchronous>, transform_indices = @transform_2, window_bounds = array<i64: 1, 128>}, {transform_indices = @transform_3, window_bounds = array<i64: 128, 128>}]} {
    %c0 = arith.constant 0 : index
    %c0_0 = arith.constant 0 : index
    %0 = vector.load %arg1[%c0, %c0_0] : memref<128x128xf32, #tpu.memory_space<vmem>>, vector<128x128xf32>
    %c0_1 = arith.constant 0 : index
    %c0_2 = arith.constant 0 : index
    %1 = vector.load %arg2[%c0_1, %c0_2] : memref<1x128xf32, #tpu.memory_space<vmem>>, vector<1x128xf32>
    %2 = vector.broadcast %1 : vector<1x128xf32> to vector<128x128xf32>
    %3 = arith.mulf %0, %2 : vector<128x128xf32>
    %c0_3 = arith.constant 0 : index
    %c0_4 = arith.constant 0 : index
    %4 = vector.load %arg3[%c0_3, %c0_4] : memref<1x128xf32, #tpu.memory_space<vmem>>, vector<1x128xf32>
    %5 = vector.broadcast %4 : vector<1x128xf32> to vector<128x128xf32>
    %6 = arith.addf %3, %5 : vector<128x128xf32>
    %cst = arith.constant 0.000000e+00 : f32
    %7 = vector.broadcast %cst : f32 to vector<128x128xf32>
    %8 = arith.cmpf ogt, %6, %7 : vector<128x128xf32>
    %cst_5 = arith.constant 0.00999999977 : f32
    %9 = vector.broadcast %cst_5 : f32 to vector<128x128xf32>
    %10 = arith.mulf %9, %6 : vector<128x128xf32>
    %11 = arith.select %8, %6, %10 : vector<128x128xi1>, vector<128x128xf32>
    %c0_6 = arith.constant 0 : index
    %c0_7 = arith.constant 0 : index
    %12 = vector.load %arg4[%c0_6, %c0_7] : memref<128x128xf32, #tpu.memory_space<vmem>>, vector<128x128xf32>
    tpu.vector_store %arg4[%c0_6, %c0_7], %11 {strides = array<i32>} : memref<128x128xf32, #tpu.memory_space<vmem>>, vector<128x128xf32>,
    return
  }
  func.func @transform_0(%arg0: i32) -> (i32, i32) {
    %c0_i32 = arith.constant 0 : i32
    %c0_i32_0 = arith.constant 0 : i32
    return %arg0, %c0_i32 : i32, i32
  }
  func.func @transform_1(%arg0: i32) -> (i32, i32) {
    %c0_i32 = arith.constant 0 : i32
    %c0_i32_0 = arith.constant 0 : i32
    %c0_i32_1 = arith.constant 0 : i32
    return %c0_i32, %c0_i32_0 : i32, i32
  }
  func.func @transform_2(%arg0: i32) -> (i32, i32) {
    %c0_i32 = arith.constant 0 : i32
    %c0_i32_0 = arith.constant 0 : i32
    %c0_i32_1 = arith.constant 0 : i32
    return %c0_i32, %c0_i32_0 : i32, i32
  }
  func.func @transform_3(%arg0: i32) -> (i32, i32) {
    %c0_i32 = arith.constant 0 : i32
    %c0_i32_0 = arith.constant 0 : i32
    return %arg0, %c0_i32 : i32, i32
  }
}

module attributes {stable_mosaic.version = 11 : i64} {
  func.func @_conv_stats_kernel(%arg0: i32, %arg1: memref<128x128xbf16, #tpu.memory_space<vmem>>, %arg2: memref<128x128xbf16, #tpu.memory_space<vmem>>, %arg3: memref<128x128xf32, #tpu.memory_space<vmem>>, %arg4: memref<2x128xf32, #tpu.memory_space<vmem>>) attributes {dimension_semantics = [#tpu.dimension_semantics<arbitrary>], iteration_bounds = array<i64: 1>, scalar_prefetch = 0 : i64, scratch_operands = 0 : i64, tpu.core_type = #tpu.core_type<tc>, window_params = [{transform_indices = @transform_0, window_bounds = array<i64: 128, 128>}, {pipeline_mode = #tpu.pipeline_mode<synchronous>, transform_indices = @transform_1, window_bounds = array<i64: 128, 128>}, {transform_indices = @transform_2, window_bounds = array<i64: 128, 128>}, {pipeline_mode = #tpu.pipeline_mode<synchronous>, transform_indices = @transform_3, window_bounds = array<i64: 2, 128>}]} {
    %c0 = arith.constant 0 : index
    %c0_0 = arith.constant 0 : index
    %0 = vector.load %arg1[%c0, %c0_0] : memref<128x128xbf16, #tpu.memory_space<vmem>>, vector<128x128xbf16>
    %c0_1 = arith.constant 0 : index
    %c0_2 = arith.constant 0 : index
    %1 = vector.load %arg2[%c0_1, %c0_2] : memref<128x128xbf16, #tpu.memory_space<vmem>>, vector<128x128xbf16>
    %cst = arith.constant dense<0.000000e+00> : vector<128x128xf32>
    %2 = tpu.matmul %0, %1, %cst {dimension_numbers = #tpu.dot_dimension_numbers<[1], [0], [0], [1], [0, 0, 1, 1], [], []>} : vector<128x128xbf16>, vector<128x128xbf16>, vector<128x128xf32> -> vector<128x128xf32>
    %c0_3 = arith.constant 0 : index
    %c0_4 = arith.constant 0 : index
    %3 = vector.load %arg3[%c0_3, %c0_4] : memref<128x128xf32, #tpu.memory_space<vmem>>, vector<128x128xf32>
    tpu.vector_store %arg3[%c0_3, %c0_4], %2 {strides = array<i32>} : memref<128x128xf32, #tpu.memory_space<vmem>>, vector<128x128xf32>,
    %cst_5 = arith.constant dense<0.000000e+00> : vector<128xf32>
    %4 = vector.multi_reduction <add>, %2, %cst_5 [0] : vector<128x128xf32> to vector<128xf32>
    %5 = vector.shape_cast %4 : vector<128xf32> to vector<1x128xf32>
    %6 = arith.mulf %2, %2 : vector<128x128xf32>
    %cst_6 = arith.constant dense<0.000000e+00> : vector<128xf32>
    %7 = vector.multi_reduction <add>, %6, %cst_6 [0] : vector<128x128xf32> to vector<128xf32>
    %8 = vector.shape_cast %7 : vector<128xf32> to vector<1x128xf32>
    %9 = tpu.concatenate %5, %8 in 0 : vector<1x128xf32>, vector<1x128xf32> -> vector<2x128xf32>
    %c0_i32 = arith.constant 0 : i32
    %10 = arith.cmpi eq, %arg0, %c0_i32 : i32
    %11 = arith.extui %10 : i1 to i32
    %c0_i32_7 = arith.constant 0 : i32
    %12 = arith.cmpi ne, %11, %c0_i32_7 : i32
    scf.if %12 {
      %cst_12 = arith.constant 0.000000e+00 : f32
      %16 = vector.broadcast %cst_12 : f32 to vector<2x128xf32>
      %c0_13 = arith.constant 0 : index
      %c0_14 = arith.constant 0 : index
      %17 = vector.load %arg4[%c0_13, %c0_14] : memref<2x128xf32, #tpu.memory_space<vmem>>, vector<2x128xf32>
      tpu.vector_store %arg4[%c0_13, %c0_14], %16 {strides = array<i32>} : memref<2x128xf32, #tpu.memory_space<vmem>>, vector<2x128xf32>,
    } else {
    }
    %c0_8 = arith.constant 0 : index
    %c0_9 = arith.constant 0 : index
    %13 = vector.load %arg4[%c0_8, %c0_9] : memref<2x128xf32, #tpu.memory_space<vmem>>, vector<2x128xf32>
    %14 = arith.addf %13, %9 : vector<2x128xf32>
    %c0_10 = arith.constant 0 : index
    %c0_11 = arith.constant 0 : index
    %15 = vector.load %arg4[%c0_10, %c0_11] : memref<2x128xf32, #tpu.memory_space<vmem>>, vector<2x128xf32>
    tpu.vector_store %arg4[%c0_10, %c0_11], %14 {strides = array<i32>} : memref<2x128xf32, #tpu.memory_space<vmem>>, vector<2x128xf32>,
    return
  }
  func.func @transform_0(%arg0: i32) -> (i32, i32) {
    %c0_i32 = arith.constant 0 : i32
    %c0_i32_0 = arith.constant 0 : i32
    return %arg0, %c0_i32 : i32, i32
  }
  func.func @transform_1(%arg0: i32) -> (i32, i32) {
    %c0_i32 = arith.constant 0 : i32
    %c0_i32_0 = arith.constant 0 : i32
    %c0_i32_1 = arith.constant 0 : i32
    return %c0_i32, %c0_i32_0 : i32, i32
  }
  func.func @transform_2(%arg0: i32) -> (i32, i32) {
    %c0_i32 = arith.constant 0 : i32
    %c0_i32_0 = arith.constant 0 : i32
    return %arg0, %c0_i32 : i32, i32
  }
  func.func @transform_3(%arg0: i32) -> (i32, i32) {
    %c0_i32 = arith.constant 0 : i32
    %c0_i32_0 = arith.constant 0 : i32
    %c0_i32_1 = arith.constant 0 : i32
    return %c0_i32, %c0_i32_0 : i32, i32
  }
}

</mosaic_0001>

<llo_original>
// kernel: downsample_forward.3
$region0: #{downsample_forward.3}
  #allocation0 [shape = 'u32[]', space=smem, size = 0x4, offset = 0x4, fixed_abs, tag = 'smem constant byte address 0x4 - core index']
  #allocation1 [shape = 'u32[144,128]{1,0:T(1,128)}', space=vmem, size = 0x12000, scoped, tag = 'internal scratch']
  %s0 = inlined_call_operand.vmem [shape: f32[128,128], index: 0, kind: input, shape index: {}]
  %s1 = inlined_call_operand.vmem [shape: f32[1,128], index: 1, kind: input, shape index: {}]
  %s2 = inlined_call_operand.vmem [shape: f32[1,128], index: 2, kind: input, shape index: {}]
  %s3 = inlined_call_operand.vmem [shape: f32[128,128], index: 3, kind: output, shape index: {}]
  %s4 = sld [smem:[#allocation0]]
  $region22: #{downsample_forward.3} parent=0
    _
  %s6 = ssub.s32 1, %s4
  %s7 = scalar_select 0, %s6, %s4
  // Predicated region
  $region2: #{downsample_forward.3} parent=0 // pred_check
    _
  $region3: #{downsample_forward.3} parent=0 // pred_check_branch
    %9 = sbr.rel (0) target = $region5
  $region4: #{downsample_forward.3} parent=0 // pred_region
    _
  $region5: #{downsample_forward.3} parent=0 // pred_fallthru
    _
  // Predicated region
  $region6: #{downsample_forward.3} parent=0 // pred_check
    _
  $region7: #{downsample_forward.3} parent=0 // pred_check_branch
    %11 = sbr.rel (0) target = $region9
  $region8: #{downsample_forward.3} parent=0 // pred_region
    _
  $region9: #{downsample_forward.3} parent=0 // pred_fallthru
    _
  // Predicated region
  $region10: #{downsample_forward.3} parent=0 // pred_check
    _
  $region11: #{downsample_forward.3} parent=0 // pred_check_branch
    %13 = sbr.rel (0) target = $region13
  $region12: #{downsample_forward.3} parent=0 // pred_region
    _
  $region13: #{downsample_forward.3} parent=0 // pred_fallthru
    _
  %v14 = vld [vmem:[%s0] sm:$0xff]
  %v15 = vld [vmem:[%s0 + $0x8] sm:$0xff]
  %v16 = vld [vmem:[%s0 + $0x10] sm:$0xff]
  %v17 = vld [vmem:[%s0 + $0x18] sm:$0xff]
  %v18 = vld [vmem:[%s0 + $0x20] sm:$0xff]
  %v19 = vld [vmem:[%s0 + $0x28] sm:$0xff]
  %v20 = vld [vmem:[%s0 + $0x30] sm:$0xff]
  %v21 = vld [vmem:[%s0 + $0x38] sm:$0xff]
  %v22 = vld [vmem:[%s0 + $0x40] sm:$0xff]
  %v23 = vld [vmem:[%s0 + $0x48] sm:$0xff]
  %v24 = vld [vmem:[%s0 + $0x50] sm:$0xff]
  %v25 = vld [vmem:[%s0 + $0x58] sm:$0xff]
  %v26 = vld [vmem:[%s0 + $0x60] sm:$0xff]
  %v27 = vld [vmem:[%s0 + $0x68] sm:$0xff]
  %v28 = vld [vmem:[%s0 + $0x70] sm:$0xff]
  %v29 = vld [vmem:[%s0 + $0x78] sm:$0xff]
  %v30 = vld [vmem:[%s1] sm:$0x1]
  %v32 = vlaneseq
  %v33 = vshrl.u32 %v32, 7
  %v34 = vsub.s32 0, %v33
  %v35 = vrot.slane %v30, %v34
  %v37 = vmul.f32 %v14, %v35
  %v38 = vmul.f32 %v15, %v35
  %v39 = vmul.f32 %v16, %v35
  %v40 = vmul.f32 %v17, %v35
  %v41 = vmul.f32 %v18, %v35
  %v42 = vmul.f32 %v19, %v35
  %v43 = vmul.f32 %v20, %v35
  %v44 = vmul.f32 %v21, %v35
  %v45 = vmul.f32 %v22, %v35
  %v46 = vmul.f32 %v23, %v35
  %v47 = vmul.f32 %v24, %v35
  %v48 = vmul.f32 %v25, %v35
  %v49 = vmul.f32 %v26, %v35
  %v50 = vmul.f32 %v27, %v35
  %v51 = vmul.f32 %v28, %v35
  %v52 = vmul.f32 %v29, %v35
  %v53 = vld [vmem:[%s2] sm:$0x1]
  %v55 = vlaneseq
  %v56 = vshrl.u32 %v55, 7
  %v57 = vsub.s32 0, %v56
  %v58 = vrot.slane %v53, %v57
  %v60 = vadd.f32 %v37, %v58
  %v61 = vadd.f32 %v38, %v58
  %v62 = vadd.f32 %v39, %v58
  %v63 = vadd.f32 %v40, %v58
  %v64 = vadd.f32 %v41, %v58
  %v65 = vadd.f32 %v42, %v58
  %v66 = vadd.f32 %v43, %v58
  %v67 = vadd.f32 %v44, %v58
  %v68 = vadd.f32 %v45, %v58
  %v69 = vadd.f32 %v46, %v58
  %v70 = vadd.f32 %v47, %v58
  %v71 = vadd.f32 %v48, %v58
  %v72 = vadd.f32 %v49, %v58
  %v73 = vadd.f32 %v50, %v58
  %v74 = vadd.f32 %v51, %v58
  %v75 = vadd.f32 %v52, %v58
  %vm76 = vcmp.gt.f32.partialorder %v60, 0.0
  %vm77 = vcmp.gt.f32.partialorder %v61, 0.0
  %vm78 = vcmp.gt.f32.partialorder %v62, 0.0
  %vm79 = vcmp.gt.f32.partialorder %v63, 0.0
  %vm80 = vcmp.gt.f32.partialorder %v64, 0.0
  %vm81 = vcmp.gt.f32.partialorder %v65, 0.0
  %vm82 = vcmp.gt.f32.partialorder %v66, 0.0
  %vm83 = vcmp.gt.f32.partialorder %v67, 0.0
  %vm84 = vcmp.gt.f32.partialorder %v68, 0.0
  %vm85 = vcmp.gt.f32.partialorder %v69, 0.0
  %vm86 = vcmp.gt.f32.partialorder %v70, 0.0
  %vm87 = vcmp.gt.f32.partialorder %v71, 0.0
  %vm88 = vcmp.gt.f32.partialorder %v72, 0.0
  %vm89 = vcmp.gt.f32.partialorder %v73, 0.0
  %vm90 = vcmp.gt.f32.partialorder %v74, 0.0
  %vm91 = vcmp.gt.f32.partialorder %v75, 0.0
  %v92 = vmul.f32 %v60, 0.01
  %v93 = vmul.f32 %v61, 0.01
  %v94 = vmul.f32 %v62, 0.01
  %v95 = vmul.f32 %v63, 0.01
  %v96 = vmul.f32 %v64, 0.01
  %v97 = vmul.f32 %v65, 0.01
  %v98 = vmul.f32 %v66, 0.01
  %v99 = vmul.f32 %v67, 0.01
  %v100 = vmul.f32 %v68, 0.01
  %v101 = vmul.f32 %v69, 0.01
  %v102 = vmul.f32 %v70, 0.01
  %v103 = vmul.f32 %v71, 0.01
  %v104 = vmul.f32 %v72, 0.01
  %v105 = vmul.f32 %v73, 0.01
  %v106 = vmul.f32 %v74, 0.01
  %v107 = vmul.f32 %v75, 0.01
  %v108 = vsel %vm76, %v60, %v92
  %v109 = vsel %vm77, %v61, %v93
  %v110 = vsel %vm78, %v62, %v94
  %v111 = vsel %vm79, %v63, %v95
  %v112 = vsel %vm80, %v64, %v96
  %v113 = vsel %vm81, %v65, %v97
  %v114 = vsel %vm82, %v66, %v98
  %v115 = vsel %vm83, %v67, %v99
  %v116 = vsel %vm84, %v68, %v100
  %v117 = vsel %vm85, %v69, %v101
  %v118 = vsel %vm86, %v70, %v102
  %v119 = vsel %vm87, %v71, %v103
  %v120 = vsel %vm88, %v72, %v104
  %v121 = vsel %vm89, %v73, %v105
  %v122 = vsel %vm90, %v74, %v106
  %v123 = vsel %vm91, %v75, %v107
  %124 = vst [vmem:[%s3] sm:$0xff] %v108
  %125 = vst [vmem:[%s3 + $0x8] sm:$0xff] %v109
  %126 = vst [vmem:[%s3 + $0x10] sm:$0xff] %v110
  %127 = vst [vmem:[%s3 + $0x18] sm:$0xff] %v111
  %128 = vst [vmem:[%s3 + $0x20] sm:$0xff] %v112
  %129 = vst [vmem:[%s3 + $0x28] sm:$0xff] %v113
  %130 = vst [vmem:[%s3 + $0x30] sm:$0xff] %v114
  %131 = vst [vmem:[%s3 + $0x38] sm:$0xff] %v115
  %132 = vst [vmem:[%s3 + $0x40] sm:$0xff] %v116
  %133 = vst [vmem:[%s3 + $0x48] sm:$0xff] %v117
  %134 = vst [vmem:[%s3 + $0x50] sm:$0xff] %v118
  %135 = vst [vmem:[%s3 + $0x58] sm:$0xff] %v119
  %136 = vst [vmem:[%s3 + $0x60] sm:$0xff] %v120
  %137 = vst [vmem:[%s3 + $0x68] sm:$0xff] %v121
  %138 = vst [vmem:[%s3 + $0x70] sm:$0xff] %v122
  %139 = vst [vmem:[%s3 + $0x78] sm:$0xff] %v123
  // Predicated region
  $region14: #{downsample_forward.3} parent=0 // pred_check
    _
  $region15: #{downsample_forward.3} parent=0 // pred_check_branch
    %141 = sbr.rel (0) target = $region17
  $region16: #{downsample_forward.3} parent=0 // pred_region
    _
  $region17: #{downsample_forward.3} parent=0 // pred_fallthru
    _
  // Predicated region
  $region18: #{downsample_forward.3} parent=0 // pred_check
    _
  $region19: #{downsample_forward.3} parent=0 // pred_check_branch
    %143 = sbr.rel (0) target = $region21
  $region20: #{downsample_forward.3} parent=0 // pred_region
    _
  $region21: #{downsample_forward.3} parent=0 // pred_fallthru
    _

// kernel: downsample_forward.2
$region0: #{downsample_forward.2}
  #allocation0 [shape = 'u32[]', space=smem, size = 0x4, offset = 0x4, fixed_abs, tag = 'smem constant byte address 0x4 - core index']
  #allocation1 [shape = 'u32[144,128]{1,0:T(1,128)}', space=vmem, size = 0x12000, scoped, tag = 'internal scratch']
  %s0 = inlined_call_operand.vmem [shape: bf16[128,128], index: 0, kind: input, shape index: {}]
  %s1 = inlined_call_operand.vmem [shape: bf16[128,128], index: 1, kind: input, shape index: {}]
  %s2 = inlined_call_operand.vmem [shape: f32[128,128], index: 2, kind: output, shape index: {0}]
  %s3 = inlined_call_operand.vmem [shape: f32[2,128], index: 3, kind: output, shape index: {1}]
  %4 = xla_tuple %s2, %s3
  %s5 = sld [smem:[#allocation0]]
  $region30: #{downsample_forward.2} parent=0
    _
  %s7 = ssub.s32 1, %s5
  %s8 = scalar_select 0, %s7, %s5
  // Predicated region
  $region2: #{downsample_forward.2} parent=0 // pred_check
    _
  $region3: #{downsample_forward.2} parent=0 // pred_check_branch
    %10 = sbr.rel (0) target = $region5
  $region4: #{downsample_forward.2} parent=0 // pred_region
    _
  $region5: #{downsample_forward.2} parent=0 // pred_fallthru
    _
  // Predicated region
  $region6: #{downsample_forward.2} parent=0 // pred_check
    _
  $region7: #{downsample_forward.2} parent=0 // pred_check_branch
    %12 = sbr.rel (0) target = $region9
  $region8: #{downsample_forward.2} parent=0 // pred_region
    _
  $region9: #{downsample_forward.2} parent=0 // pred_fallthru
    _
  %v14 = vld [vmem:[%s0] sm:$0xf]
  %v15 = vld [vmem:[%s0 + $0x4] sm:$0xf]
  %v16 = vld [vmem:[%s0 + $0x8] sm:$0xf]
  %v17 = vld [vmem:[%s0 + $0xc] sm:$0xf]
  %v18 = vld [vmem:[%s0 + $0x10] sm:$0xf]
  %v19 = vld [vmem:[%s0 + $0x14] sm:$0xf]
  %v20 = vld [vmem:[%s0 + $0x18] sm:$0xf]
  %v21 = vld [vmem:[%s0 + $0x1c] sm:$0xf]
  %v22 = vld [vmem:[%s0 + $0x20] sm:$0xf]
  %v23 = vld [vmem:[%s0 + $0x24] sm:$0xf]
  %v24 = vld [vmem:[%s0 + $0x28] sm:$0xf]
  %v25 = vld [vmem:[%s0 + $0x2c] sm:$0xf]
  %v26 = vld [vmem:[%s0 + $0x30] sm:$0xf]
  %v27 = vld [vmem:[%s0 + $0x34] sm:$0xf]
  %v28 = vld [vmem:[%s0 + $0x38] sm:$0xf]
  %v29 = vld [vmem:[%s0 + $0x3c] sm:$0xf]
  %v30 = vld [vmem:[%s1] sm:$0xf]
  %v31 = vld [vmem:[%s1 + $0x4] sm:$0xf]
  %v32 = vld [vmem:[%s1 + $0x8] sm:$0xf]
  %v33 = vld [vmem:[%s1 + $0xc] sm:$0xf]
  %v34 = vld [vmem:[%s1 + $0x10] sm:$0xf]
  %v35 = vld [vmem:[%s1 + $0x14] sm:$0xf]
  %v36 = vld [vmem:[%s1 + $0x18] sm:$0xf]
  %v37 = vld [vmem:[%s1 + $0x1c] sm:$0xf]
  %v38 = vld [vmem:[%s1 + $0x20] sm:$0xf]
  %v39 = vld [vmem:[%s1 + $0x24] sm:$0xf]
  %v40 = vld [vmem:[%s1 + $0x28] sm:$0xf]
  %v41 = vld [vmem:[%s1 + $0x2c] sm:$0xf]
  %v42 = vld [vmem:[%s1 + $0x30] sm:$0xf]
  %v43 = vld [vmem:[%s1 + $0x34] sm:$0xf]
  %v44 = vld [vmem:[%s1 + $0x38] sm:$0xf]
  %v45 = vld [vmem:[%s1 + $0x3c] sm:$0xf]
  %v62 = vunpack.c.l.b16 %v14
  %v63 = vunpack.c.l.b16 %v15
  %v64 = vunpack.c.l.b16 %v16
  %v65 = vunpack.c.l.b16 %v17
  %v66 = vunpack.c.l.b16 %v18
  %v67 = vunpack.c.l.b16 %v19
  %v68 = vunpack.c.l.b16 %v20
  %v69 = vunpack.c.l.b16 %v21
  %v70 = vunpack.c.l.b16 %v22
  %v71 = vunpack.c.l.b16 %v23
  %v72 = vunpack.c.l.b16 %v24
  %v73 = vunpack.c.l.b16 %v25
  %v74 = vunpack.c.l.b16 %v26
  %v75 = vunpack.c.l.b16 %v27
  %v76 = vunpack.c.l.b16 %v28
  %v77 = vunpack.c.l.b16 %v29
  %v78 = vpack.c.b16 %v63, %v62
  %v79 = vpack.c.b16 %v65, %v64
  %v80 = vpack.c.b16 %v67, %v66
  %v81 = vpack.c.b16 %v69, %v68
  %v82 = vpack.c.b16 %v71, %v70
  %v83 = vpack.c.b16 %v73, %v72
  %v84 = vpack.c.b16 %v75, %v74
  %v85 = vpack.c.b16 %v77, %v76
  %v110 = vunpack.c.l.b16 %v30
  %v111 = vunpack.c.l.b16 %v31
  %v112 = vunpack.c.l.b16 %v32
  %v113 = vunpack.c.l.b16 %v33
  %v114 = vunpack.c.l.b16 %v34
  %v115 = vunpack.c.l.b16 %v35
  %v116 = vunpack.c.l.b16 %v36
  %v117 = vunpack.c.l.b16 %v37
  %v118 = vunpack.c.l.b16 %v38
  %v119 = vunpack.c.l.b16 %v39
  %v120 = vunpack.c.l.b16 %v40
  %v121 = vunpack.c.l.b16 %v41
  %v122 = vunpack.c.l.b16 %v42
  %v123 = vunpack.c.l.b16 %v43
  %v124 = vunpack.c.l.b16 %v44
  %v125 = vunpack.c.l.b16 %v45
  %v126 = vpack.c.b16 %v111, %v110
  %v127 = vpack.c.b16 %v113, %v112
  %v128 = vpack.c.b16 %v115, %v114
  %v129 = vpack.c.b16 %v117, %v116
  %v130 = vpack.c.b16 %v119, %v118
  %v131 = vpack.c.b16 %v121, %v120
  %v132 = vpack.c.b16 %v123, %v122
  %v133 = vpack.c.b16 %v125, %v124
  %142 = vmatprep.subr.bf16.mxu0 0
  %143 = vmatpush1.bf16.msra.mxu0 %v133
  %144 = vmatprep.subr.bf16.mxu0 0
  %145 = vmatpush1.bf16.msra.mxu0 %v132
  %146 = vmatprep.subr.bf16.mxu0 0
  %147 = vmatpush1.bf16.msra.mxu0 %v131
  %148 = vmatprep.subr.bf16.mxu0 0
  %149 = vmatpush1.bf16.msra.mxu0 %v130
  %150 = vmatprep.subr.bf16.mxu0 0
  %151 = vmatpush1.bf16.msra.mxu0 %v129
  %152 = vmatprep.subr.bf16.mxu0 0
  %153 = vmatpush1.bf16.msra.mxu0 %v128
  %154 = vmatprep.subr.bf16.mxu0 0
  %155 = vmatpush1.bf16.msra.mxu0 %v127
  %156 = vmatprep.subr.bf16.mxu0 0
  %157 = vmatpush1.bf16.msra.mxu0 %v126
  %158 = vmatprep.subr.bf16.mxu0 0
  %159 = vmatpush2.bf16.msra.mxu0 0
  %160 = vmatprep.subr.bf16.mxu0 0
  %161 = vmatpush2.bf16.msra.mxu0 0
  %162 = vmatprep.subr.bf16.mxu0 0
  %163 = vmatpush2.bf16.msra.mxu0 0
  %164 = vmatprep.subr.bf16.mxu0 0
  %165 = vmatpush2.bf16.msra.mxu0 0
  %166 = vmatprep.subr.bf16.mxu0 0
  %167 = vmatpush2.bf16.msra.mxu0 0
  %168 = vmatprep.subr.bf16.mxu0 0
  %169 = vmatpush2.bf16.msra.mxu0 0
  %170 = vmatprep.subr.bf16.mxu0 0
  %171 = vmatpush2.bf16.msra.mxu0 0
  %172 = vmatprep.subr.bf16.mxu0 0
  %173 = vmatpush2.bf16.msra.mxu0 0
  %174 = vmatprep.mubr.bf16.mxu0 0
  %175 = vmatmul.mubr.bf16.gmra.mxu0 %v78
  %v176 = vpop.f32.mrf.mxu0
  %v177 = vadd.f32 0.0, %v176
  %v178 = vpop.f32.mrf.mxu0
  %v179 = vpop.f32.mrf.mxu0
  %v180 = vadd.f32 0.0, %v179
  %v181 = vpop.f32.mrf.mxu0
  %182 = vmatprep.mubr.bf16.mxu0 0
  %183 = vmatmul.mubr.bf16.gmra.mxu0 %v79
  %v184 = vpop.f32.mrf.mxu0
  %v185 = vadd.f32 0.0, %v184
  %v186 = vpop.f32.mrf.mxu0
  %v187 = vpop.f32.mrf.mxu0
  %v188 = vadd.f32 0.0, %v187
  %v189 = vpop.f32.mrf.mxu0
  %190 = vmatprep.mubr.bf16.mxu0 0
  %191 = vmatmul.mubr.bf16.gmra.mxu0 %v80
  %v192 = vpop.f32.mrf.mxu0
  %v193 = vadd.f32 0.0, %v192
  %v194 = vpop.f32.mrf.mxu0
  %v195 = vpop.f32.mrf.mxu0
  %v196 = vadd.f32 0.0, %v195
  %v197 = vpop.f32.mrf.mxu0
  %198 = vmatprep.mubr.bf16.mxu0 0
  %199 = vmatmul.mubr.bf16.gmra.mxu0 %v81
  %v200 = vpop.f32.mrf.mxu0
  %v201 = vadd.f32 0.0, %v200
  %v202 = vpop.f32.mrf.mxu0
  %v203 = vpop.f32.mrf.mxu0
  %v204 = vadd.f32 0.0, %v203
  %v205 = vpop.f32.mrf.mxu0
  %206 = vmatprep.mubr.bf16.mxu0 0
  %207 = vmatmul.mubr.bf16.gmra.mxu0 %v82
  %v208 = vpop.f32.mrf.mxu0
  %v209 = vadd.f32 0.0, %v208
  %v210 = vpop.f32.mrf.mxu0
  %v211 = vpop.f32.mrf.mxu0
  %v212 = vadd.f32 0.0, %v211
  %v213 = vpop.f32.mrf.mxu0
  %214 = vmatprep.mubr.bf16.mxu0 0
  %215 = vmatmul.mubr.bf16.gmra.mxu0 %v83
  %v216 = vpop.f32.mrf.mxu0
  %v217 = vadd.f32 0.0, %v216
  %v218 = vpop.f32.mrf.mxu0
  %v219 = vpop.f32.mrf.mxu0
  %v220 = vadd.f32 0.0, %v219
  %v221 = vpop.f32.mrf.mxu0
  %222 = vmatprep.mubr.bf16.mxu0 0
  %223 = vmatmul.mubr.bf16.gmra.mxu0 %v84
  %v224 = vpop.f32.mrf.mxu0
  %v225 = vadd.f32 0.0, %v224
  %v226 = vpop.f32.mrf.mxu0
  %v227 = vpop.f32.mrf.mxu0
  %v228 = vadd.f32 0.0, %v227
  %v229 = vpop.f32.mrf.mxu0
  %230 = vmatprep.mubr.bf16.mxu0 0
  %231 = vmatmul.mubr.bf16.gmra.mxu0 %v85
  %v232 = vpop.f32.mrf.mxu0
  %v233 = vadd.f32 0.0, %v232
  %v234 = vpop.f32.mrf.mxu0
  %v235 = vpop.f32.mrf.mxu0
  %v236 = vadd.f32 0.0, %v235
  %v237 = vpop.f32.mrf.mxu0
  %238 = vdwg.mxu0
  %239 = vst [vmem:[%s2] sm:$0xff] %v177
  %240 = vst [vmem:[%s2 + $0x8] sm:$0xff] %v180
  %241 = vst [vmem:[%s2 + $0x10] sm:$0xff] %v185
  %242 = vst [vmem:[%s2 + $0x18] sm:$0xff] %v188
  %243 = vst [vmem:[%s2 + $0x20] sm:$0xff] %v193
  %244 = vst [vmem:[%s2 + $0x28] sm:$0xff] %v196
  %245 = vst [vmem:[%s2 + $0x30] sm:$0xff] %v201
  %246 = vst [vmem:[%s2 + $0x38] sm:$0xff] %v204
  %247 = vst [vmem:[%s2 + $0x40] sm:$0xff] %v209
  %248 = vst [vmem:[%s2 + $0x48] sm:$0xff] %v212
  %249 = vst [vmem:[%s2 + $0x50] sm:$0xff] %v217
  %250 = vst [vmem:[%s2 + $0x58] sm:$0xff] %v220
  %251 = vst [vmem:[%s2 + $0x60] sm:$0xff] %v225
  %252 = vst [vmem:[%s2 + $0x68] sm:$0xff] %v228
  %253 = vst [vmem:[%s2 + $0x70] sm:$0xff] %v233
  %254 = vst [vmem:[%s2 + $0x78] sm:$0xff] %v236
  %v255 = vadd.f32 %v177, %v180
  %v256 = vadd.f32 %v255, %v185
  %v257 = vadd.f32 %v256, %v188
  %v258 = vadd.f32 %v257, %v193
  %v259 = vadd.f32 %v258, %v196
  %v260 = vadd.f32 %v259, %v201
  %v261 = vadd.f32 %v260, %v204
  %v262 = vadd.f32 %v261, %v209
  %v263 = vadd.f32 %v262, %v212
  %v264 = vadd.f32 %v263, %v217
  %v265 = vadd.f32 %v264, %v220
  %v266 = vadd.f32 %v265, %v225
  %v267 = vadd.f32 %v266, %v228
  %v268 = vadd.f32 %v267, %v233
  %v269 = vadd.f32 %v268, %v236
  %v270 = vrot.slane %v269, 4
  %v271 = vadd.f32 %v269, %v270
  %v272 = vrot.slane %v271, 2
  %v273 = vadd.f32 %v271, %v272
  %v274 = vrot.slane %v273, 1
  %v275 = vadd.f32 %v273, %v274
  %v276 = vmul.f32 %v177, %v177
  %v277 = vmul.f32 %v180, %v180
  %v278 = vmul.f32 %v185, %v185
  %v279 = vmul.f32 %v188, %v188
  %v280 = vmul.f32 %v193, %v193
  %v281 = vmul.f32 %v196, %v196
  %v282 = vmul.f32 %v201, %v201
  %v283 = vmul.f32 %v204, %v204
  %v284 = vmul.f32 %v209, %v209
  %v285 = vmul.f32 %v212, %v212
  %v286 = vmul.f32 %v217, %v217
  %v287 = vmul.f32 %v220, %v220
  %v288 = vmul.f32 %v225, %v225
  %v289 = vmul.f32 %v228, %v228
  %v290 = vmul.f32 %v233, %v233
  %v291 = vmul.f32 %v236, %v236
  %v292 = vadd.f32 %v276, %v277
  %v293 = vadd.f32 %v292, %v278
  %v294 = vadd.f32 %v293, %v279
  %v295 = vadd.f32 %v294, %v280
  %v296 = vadd.f32 %v295, %v281
  %v297 = vadd.f32 %v296, %v282
  %v298 = vadd.f32 %v297, %v283
  %v299 = vadd.f32 %v298, %v284
  %v300 = vadd.f32 %v299, %v285
  %v301 = vadd.f32 %v300, %v286
  %v302 = vadd.f32 %v301, %v287
  %v303 = vadd.f32 %v302, %v288
  %v304 = vadd.f32 %v303, %v289
  %v305 = vadd.f32 %v304, %v290
  %v306 = vadd.f32 %v305, %v291
  %v307 = vrot.slane %v306, 4
  %v308 = vadd.f32 %v306, %v307
  %v309 = vrot.slane %v308, 2
  %v310 = vadd.f32 %v308, %v309
  %v311 = vrot.slane %v310, 1
  %v312 = vadd.f32 %v310, %v311
  %vm313 = vcmask 1040384
  %v314 = vsel %vm313, %v275, %v312
  %p315 = scmp.eq.s32.totalorder 0, 0
  // Predicated region
  $region10: #{downsample_forward.2} parent=0 // pred_check
    %p316 = pneg %p315
  $region11: #{downsample_forward.2} parent=0 // pred_check_branch
    %318 = sbr.rel (%p316) target = $region13
  $region12: #{downsample_forward.2} parent=0 // pred_region
    %319 = vst [vmem:[%s3] sm:$0x3] 0.0
  $region13: #{downsample_forward.2} parent=0 // pred_fallthru
    _
  %v320 = vld [vmem:[%s3] sm:$0x3]
  %v321 = vadd.f32 %v320, %v314
  %322 = vst [vmem:[%s3] sm:$0x3] %v321
  // Predicated region
  $region14: #{downsample_forward.2} parent=0 // pred_check
    _
  $region15: #{downsample_forward.2} parent=0 // pred_check_branch
    %324 = sbr.rel (0) target = $region17
  $region16: #{downsample_forward.2} parent=0 // pred_region
    _
  $region17: #{downsample_forward.2} parent=0 // pred_fallthru
    _
  // Predicated region
  $region18: #{downsample_forward.2} parent=0 // pred_check
    _
  $region19: #{downsample_forward.2} parent=0 // pred_check_branch
    %326 = sbr.rel (0) target = $region21
  $region20: #{downsample_forward.2} parent=0 // pred_region
    _
  $region21: #{downsample_forward.2} parent=0 // pred_fallthru
    _
  // Predicated region
  $region22: #{downsample_forward.2} parent=0 // pred_check
    _
  $region23: #{downsample_forward.2} parent=0 // pred_check_branch
    %328 = sbr.rel (0) target = $region25
  $region24: #{downsample_forward.2} parent=0 // pred_region
    _
  $region25: #{downsample_forward.2} parent=0 // pred_fallthru
    _
  // Predicated region
  $region26: #{downsample_forward.2} parent=0 // pred_check
    _
  $region27: #{downsample_forward.2} parent=0 // pred_check_branch
    %330 = sbr.rel (0) target = $region29
  $region28: #{downsample_forward.2} parent=0 // pred_region
    _
  $region29: #{downsample_forward.2} parent=0 // pred_fallthru
    _

</llo_original>
